<compile_context>
chip_gen: v5e
topology: v5e:2x2
jax: 0.10.0
libtpu: 0.0.40
codegen_flags: <defaults>
</compile_context>

<pallas_src>
import math

import jax
import jax.numpy as jnp
from jax.experimental import pallas as pl
from jax.experimental.pallas import tpu as pltpu


def _leaky_relu(x, negative_slope=0.01):
    # F.leaky_relu default negative_slope = 0.01
    return jnp.where(x >= 0, x, negative_slope * x)


def _affine_t(w, b, x):
    """W @ x + b in the transposed (features-on-sublanes, batch-on-lanes) layout.

    w: (N, K)  -- PyTorch Linear weight layout (out_features, in_features)
    b: (N, 1)
    x: (K, TM)
    returns (N, TM), accumulated exactly in f32 on the VPU (K <= 16, so an
    unrolled broadcast multiply-add beats a <13%-utilized MXU matmul).
    """
    n, k = w.shape
    acc = jnp.broadcast_to(b, (n, x.shape[1]))
    for i in range(k):
        acc = acc + w[:, i:i + 1] * x[i:i + 1, :]
    return acc


def vanilla_net_kernel(x_ref, w1_ref, b1_ref, w2_ref, b2_ref, w3_ref, b3_ref,
                       out_ref):
    # x_ref: (num_inputs, TM); w{i}_ref: (out, in); b{i}_ref: (out, 1)
    x = x_ref[...]

    h1 = _leaky_relu(_affine_t(w1_ref[...], b1_ref[...], x))
    h2 = _leaky_relu(_affine_t(w2_ref[...], b2_ref[...], h1))
    logits = _affine_t(w3_ref[...], b3_ref[...], h2)          # (num_outputs, TM)

    # Softmax over the tiny, static num_outputs axis, unrolled row-wise so it
    # stays on the VPU (no padded cross-lane reduce), divide -> reciprocal*mul.
    n_out = logits.shape[0]
    m = logits[0:1, :]
    for r in range(1, n_out):
        m = jnp.maximum(m, logits[r:r + 1, :])
    e = jnp.exp(logits - m)
    s = e[0:1, :]
    for r in range(1, n_out):
        s = s + e[r:r + 1, :]
    # approx=True (EUP vrcp) is available if ~1e-4 accuracy is acceptable.
    out_ref[...] = (e * pl.reciprocal(s, approx=False)).astype(out_ref.dtype)


def _round_up(n, m):
    return ((n + m - 1) // m) * m


def vanilla_net_forward(x, params, *, block_batch=1024):
    """x: (B, num_inputs) float32; params in PyTorch layout (see init_params).

    Returns (B, num_outputs) softmax policy.
    """
    batch, num_inputs = x.shape
    hidden = params["w1"].shape[0]
    num_outputs = params["w3"].shape[0]

    # Lane-dense batch tile: a multiple of 128, capped at block_batch.
    tm = min(_round_up(block_batch, 128), _round_up(batch, 128))
    padded = _round_up(batch, tm)
    if padded != batch:
        x = jnp.pad(x, ((0, padded - batch), (0, 0)))
    x_t = x.T  # (num_inputs, padded): transpose done by XLA, outside the kernel

    grid = (padded // tm,)
    const = lambda i: (0, 0)  # weights/biases: same block every step -> VMEM-resident

    out_t = pl.pallas_call(
        vanilla_net_kernel,
        out_shape=jax.ShapeDtypeStruct((num_outputs, padded), jnp.float32),
        grid=grid,
        in_specs=[
            pl.BlockSpec((num_inputs, tm), lambda i: (0, i)),   # streaming x tile
            pl.BlockSpec((hidden, num_inputs), const),
            pl.BlockSpec((hidden, 1), const),
            pl.BlockSpec((hidden, hidden), const),
            pl.BlockSpec((hidden, 1), const),
            pl.BlockSpec((num_outputs, hidden), const),
            pl.BlockSpec((num_outputs, 1), const),
        ],
        out_specs=pl.BlockSpec((num_outputs, tm), lambda i: (0, i)),
        compiler_params=pltpu.CompilerParams(
            dimension_semantics=("parallel",)),   # shards tiles across both TCs on v7x
    )(x_t,
      params["w1"], params["b1"],
      params["w2"], params["b2"],
      params["w3"], params["b3"])

    return out_t.T[:batch]


def init_params(key, num_inputs, num_outputs, hidden=16):
    """Mirror the PyTorch module:
      weight: (out_features, in_features), kaiming_uniform_(a=0.01)
              -> bound = sqrt(6 / ((1 + a^2) * fan_in))
      bias:   nn.Linear default -> uniform(-1/sqrt(fan_in), 1/sqrt(fan_in)),
              stored as (out_features, 1) for the kernel's column layout.
    """
    dims = [(num_inputs, hidden), (hidden, hidden), (hidden, num_outputs)]
    params = {}
    a = 0.01
    for i, (fan_in, fan_out) in enumerate(dims, start=1):
        key, kw, kb = jax.random.split(key, 3)
        w_bound = math.sqrt(6.0 / ((1.0 + a * a) * fan_in))
        b_bound = 1.0 / math.sqrt(fan_in)
        params[f"w{i}"] = jax.random.uniform(
            kw, (fan_out, fan_in), jnp.float32, -w_bound, w_bound)
        params[f"b{i}"] = jax.random.uniform(
            kb, (fan_out, 1), jnp.float32, -b_bound, b_bound)
    return params


def vanilla_net_ref(x, params):
    """Pure-JAX reference (exact-f32 matmuls to match the kernel's FMA path)."""
    hp = jax.lax.Precision.HIGHEST
    h1 = _leaky_relu(jnp.dot(x, params["w1"].T, precision=hp) + params["b1"][:, 0])
    h2 = _leaky_relu(jnp.dot(h1, params["w2"].T, precision=hp) + params["b2"][:, 0])
    logits = jnp.dot(h2, params["w3"].T, precision=hp) + params["b3"][:, 0]
    return jax.nn.softmax(logits, axis=-1)


if __name__ == "__main__":
    num_inputs = 4    # e.g. CartPole observation dim
    num_outputs = 2   # discrete action dim
    batch = 300       # not a multiple of the tile -> exercises padding + multi-step grid

    key = jax.random.PRNGKey(0)
    key, kx = jax.random.split(key)
    x = jax.random.normal(kx, (batch, num_inputs), jnp.float32)

    params = init_params(key, num_inputs, num_outputs)

    # block_batch=128 only to force a multi-step grid at this small test size;
    # real batched rollouts should use the default 1024+ tiles.
    policy = vanilla_net_forward(x, params, block_batch=128)
    policy = jax.block_until_ready(policy)

    ref = vanilla_net_ref(x, params)
    assert policy.shape == (batch, num_outputs)
    assert jnp.allclose(policy, ref, atol=1e-5, rtol=1e-5)
    assert jnp.allclose(jnp.sum(policy, axis=-1), 1.0, atol=1e-5)

    print("KERNEL_OK")
</pallas_src>

<mosaic_0001>
module attributes {stable_mosaic.version = 11 : i64} {
  func.func @vanilla_net_kernel(%arg0: i32, %arg1: memref<4x128xf32, #tpu.memory_space<vmem>>, %arg2: memref<16x4xf32, #tpu.memory_space<vmem>>, %arg3: memref<16x1xf32, #tpu.memory_space<vmem>>, %arg4: memref<16x16xf32, #tpu.memory_space<vmem>>, %arg5: memref<16x1xf32, #tpu.memory_space<vmem>>, %arg6: memref<2x16xf32, #tpu.memory_space<vmem>>, %arg7: memref<2x1xf32, #tpu.memory_space<vmem>>, %arg8: memref<2x128xf32, #tpu.memory_space<vmem>>) attributes {dimension_semantics = [#tpu.dimension_semantics<parallel>], iteration_bounds = array<i64: 3>, scalar_prefetch = 0 : i64, scratch_operands = 0 : i64, tpu.core_type = #tpu.core_type<tc>, window_params = [{transform_indices = @transform_0, window_bounds = array<i64: 4, 128>}, {pipeline_mode = #tpu.pipeline_mode<synchronous>, transform_indices = @transform_1, window_bounds = array<i64: 16, 4>}, {pipeline_mode = #tpu.pipeline_mode<synchronous>, transform_indices = @transform_2, window_bounds = array<i64: 16, 1>}, {pipeline_mode = #tpu.pipeline_mode<synchronous>, transform_indices = @transform_3, window_bounds = array<i64: 16, 16>}, {pipeline_mode = #tpu.pipeline_mode<synchronous>, transform_indices = @transform_4, window_bounds = array<i64: 16, 1>}, {pipeline_mode = #tpu.pipeline_mode<synchronous>, transform_indices = @transform_5, window_bounds = array<i64: 2, 16>}, {pipeline_mode = #tpu.pipeline_mode<synchronous>, transform_indices = @transform_6, window_bounds = array<i64: 2, 1>}, {transform_indices = @transform_7, window_bounds = array<i64: 2, 128>}]} {
    %c0 = arith.constant 0 : index
    %c0_0 = arith.constant 0 : index
    %0 = vector.load %arg1[%c0, %c0_0] : memref<4x128xf32, #tpu.memory_space<vmem>>, vector<4x128xf32>
    %c0_1 = arith.constant 0 : index
    %c0_2 = arith.constant 0 : index
    %1 = vector.load %arg2[%c0_1, %c0_2] : memref<16x4xf32, #tpu.memory_space<vmem>>, vector<16x4xf32>
    %c0_3 = arith.constant 0 : index
    %c0_4 = arith.constant 0 : index
    %2 = vector.load %arg3[%c0_3, %c0_4] : memref<16x1xf32, #tpu.memory_space<vmem>>, vector<16x1xf32>
    %3 = vector.shape_cast %2 : vector<16x1xf32> to vector<16x1xf32>
    %4 = vector.broadcast %3 : vector<16x1xf32> to vector<16x128xf32>
    %5 = vector.extract_strided_slice %1 {offsets = [0, 0], sizes = [16, 1], strides = [1, 1]} : vector<16x4xf32> to vector<16x1xf32>
    %6 = vector.extract_strided_slice %0 {offsets = [0, 0], sizes = [1, 128], strides = [1, 1]} : vector<4x128xf32> to vector<1x128xf32>
    %7 = vector.broadcast %5 : vector<16x1xf32> to vector<16x128xf32>
    %8 = vector.broadcast %6 : vector<1x128xf32> to vector<16x128xf32>
    %9 = arith.mulf %7, %8 : vector<16x128xf32>
    %10 = arith.addf %4, %9 : vector<16x128xf32>
    %11 = vector.extract_strided_slice %1 {offsets = [0, 1], sizes = [16, 1], strides = [1, 1]} : vector<16x4xf32> to vector<16x1xf32>
    %12 = vector.extract_strided_slice %0 {offsets = [1, 0], sizes = [1, 128], strides = [1, 1]} : vector<4x128xf32> to vector<1x128xf32>
    %13 = vector.broadcast %11 : vector<16x1xf32> to vector<16x128xf32>
    %14 = vector.broadcast %12 : vector<1x128xf32> to vector<16x128xf32>
    %15 = arith.mulf %13, %14 : vector<16x128xf32>
    %16 = arith.addf %10, %15 : vector<16x128xf32>
    %17 = vector.extract_strided_slice %1 {offsets = [0, 2], sizes = [16, 1], strides = [1, 1]} : vector<16x4xf32> to vector<16x1xf32>
    %18 = vector.extract_strided_slice %0 {offsets = [2, 0], sizes = [1, 128], strides = [1, 1]} : vector<4x128xf32> to vector<1x128xf32>
    %19 = vector.broadcast %17 : vector<16x1xf32> to vector<16x128xf32>
    %20 = vector.broadcast %18 : vector<1x128xf32> to vector<16x128xf32>
    %21 = arith.mulf %19, %20 : vector<16x128xf32>
    %22 = arith.addf %16, %21 : vector<16x128xf32>
    %23 = vector.extract_strided_slice %1 {offsets = [0, 3], sizes = [16, 1], strides = [1, 1]} : vector<16x4xf32> to vector<16x1xf32>
    %24 = vector.extract_strided_slice %0 {offsets = [3, 0], sizes = [1, 128], strides = [1, 1]} : vector<4x128xf32> to vector<1x128xf32>
    %25 = vector.broadcast %23 : vector<16x1xf32> to vector<16x128xf32>
    %26 = vector.broadcast %24 : vector<1x128xf32> to vector<16x128xf32>
    %27 = arith.mulf %25, %26 : vector<16x128xf32>
    %28 = arith.addf %22, %27 : vector<16x128xf32>
    %cst = arith.constant 0.000000e+00 : f32
    %29 = vector.broadcast %cst : f32 to vector<16x128xf32>
    %30 = arith.cmpf oge, %28, %29 : vector<16x128xf32>
    %cst_5 = arith.constant 0.00999999977 : f32
    %31 = vector.broadcast %cst_5 : f32 to vector<16x128xf32>
    %32 = arith.mulf %31, %28 : vector<16x128xf32>
    %33 = arith.select %30, %28, %32 : vector<16x128xi1>, vector<16x128xf32>
    %c0_6 = arith.constant 0 : index
    %c0_7 = arith.constant 0 : index
    %34 = vector.load %arg4[%c0_6, %c0_7] : memref<16x16xf32, #tpu.memory_space<vmem>>, vector<16x16xf32>
    %c0_8 = arith.constant 0 : index
    %c0_9 = arith.constant 0 : index
    %35 = vector.load %arg5[%c0_8, %c0_9] : memref<16x1xf32, #tpu.memory_space<vmem>>, vector<16x1xf32>
    %36 = vector.shape_cast %35 : vector<16x1xf32> to vector<16x1xf32>
    %37 = vector.broadcast %36 : vector<16x1xf32> to vector<16x128xf32>
    %38 = vector.extract_strided_slice %34 {offsets = [0, 0], sizes = [16, 1], strides = [1, 1]} : vector<16x16xf32> to vector<16x1xf32>
    %39 = vector.extract_strided_slice %33 {offsets = [0, 0], sizes = [1, 128], strides = [1, 1]} : vector<16x128xf32> to vector<1x128xf32>
    %40 = vector.broadcast %38 : vector<16x1xf32> to vector<16x128xf32>
    %41 = vector.broadcast %39 : vector<1x128xf32> to vector<16x128xf32>
    %42 = arith.mulf %40, %41 : vector<16x128xf32>
    %43 = arith.addf %37, %42 : vector<16x128xf32>
    %44 = vector.extract_strided_slice %34 {offsets = [0, 1], sizes = [16, 1], strides = [1, 1]} : vector<16x16xf32> to vector<16x1xf32>
    %45 = vector.extract_strided_slice %33 {offsets = [1, 0], sizes = [1, 128], strides = [1, 1]} : vector<16x128xf32> to vector<1x128xf32>
    %46 = vector.broadcast %44 : vector<16x1xf32> to vector<16x128xf32>
    %47 = vector.broadcast %45 : vector<1x128xf32> to vector<16x128xf32>
    %48 = arith.mulf %46, %47 : vector<16x128xf32>
    %49 = arith.addf %43, %48 : vector<16x128xf32>
    %50 = vector.extract_strided_slice %34 {offsets = [0, 2], sizes = [16, 1], strides = [1, 1]} : vector<16x16xf32> to vector<16x1xf32>
    %51 = vector.extract_strided_slice %33 {offsets = [2, 0], sizes = [1, 128], strides = [1, 1]} : vector<16x128xf32> to vector<1x128xf32>
    %52 = vector.broadcast %50 : vector<16x1xf32> to vector<16x128xf32>
    %53 = vector.broadcast %51 : vector<1x128xf32> to vector<16x128xf32>
    %54 = arith.mulf %52, %53 : vector<16x128xf32>
    %55 = arith.addf %49, %54 : vector<16x128xf32>
    %56 = vector.extract_strided_slice %34 {offsets = [0, 3], sizes = [16, 1], strides = [1, 1]} : vector<16x16xf32> to vector<16x1xf32>
    %57 = vector.extract_strided_slice %33 {offsets = [3, 0], sizes = [1, 128], strides = [1, 1]} : vector<16x128xf32> to vector<1x128xf32>
    %58 = vector.broadcast %56 : vector<16x1xf32> to vector<16x128xf32>
    %59 = vector.broadcast %57 : vector<1x128xf32> to vector<16x128xf32>
    %60 = arith.mulf %58, %59 : vector<16x128xf32>
    %61 = arith.addf %55, %60 : vector<16x128xf32>
    %62 = vector.extract_strided_slice %34 {offsets = [0, 4], sizes = [16, 1], strides = [1, 1]} : vector<16x16xf32> to vector<16x1xf32>
    %63 = vector.extract_strided_slice %33 {offsets = [4, 0], sizes = [1, 128], strides = [1, 1]} : vector<16x128xf32> to vector<1x128xf32>
    %64 = vector.broadcast %62 : vector<16x1xf32> to vector<16x128xf32>
    %65 = vector.broadcast %63 : vector<1x128xf32> to vector<16x128xf32>
    %66 = arith.mulf %64, %65 : vector<16x128xf32>
    %67 = arith.addf %61, %66 : vector<16x128xf32>
    %68 = vector.extract_strided_slice %34 {offsets = [0, 5], sizes = [16, 1], strides = [1, 1]} : vector<16x16xf32> to vector<16x1xf32>
    %69 = vector.extract_strided_slice %33 {offsets = [5, 0], sizes = [1, 128], strides = [1, 1]} : vector<16x128xf32> to vector<1x128xf32>
    %70 = vector.broadcast %68 : vector<16x1xf32> to vector<16x128xf32>
    %71 = vector.broadcast %69 : vector<1x128xf32> to vector<16x128xf32>
    %72 = arith.mulf %70, %71 : vector<16x128xf32>
    %73 = arith.addf %67, %72 : vector<16x128xf32>
    %74 = vector.extract_strided_slice %34 {offsets = [0, 6], sizes = [16, 1], strides = [1, 1]} : vector<16x16xf32> to vector<16x1xf32>
    %75 = vector.extract_strided_slice %33 {offsets = [6, 0], sizes = [1, 128], strides = [1, 1]} : vector<16x128xf32> to vector<1x128xf32>
    %76 = vector.broadcast %74 : vector<16x1xf32> to vector<16x128xf32>
    %77 = vector.broadcast %75 : vector<1x128xf32> to vector<16x128xf32>
    %78 = arith.mulf %76, %77 : vector<16x128xf32>
    %79 = arith.addf %73, %78 : vector<16x128xf32>
    %80 = vector.extract_strided_slice %34 {offsets = [0, 7], sizes = [16, 1], strides = [1, 1]} : vector<16x16xf32> to vector<16x1xf32>
    %81 = vector.extract_strided_slice %33 {offsets = [7, 0], sizes = [1, 128], strides = [1, 1]} : vector<16x128xf32> to vector<1x128xf32>
    %82 = vector.broadcast %80 : vector<16x1xf32> to vector<16x128xf32>
    %83 = vector.broadcast %81 : vector<1x128xf32> to vector<16x128xf32>
    %84 = arith.mulf %82, %83 : vector<16x128xf32>
    %85 = arith.addf %79, %84 : vector<16x128xf32>
    %86 = vector.extract_strided_slice %34 {offsets = [0, 8], sizes = [16, 1], strides = [1, 1]} : vector<16x16xf32> to vector<16x1xf32>
    %87 = vector.extract_strided_slice %33 {offsets = [8, 0], sizes = [1, 128], strides = [1, 1]} : vector<16x128xf32> to vector<1x128xf32>
    %88 = vector.broadcast %86 : vector<16x1xf32> to vector<16x128xf32>
    %89 = vector.broadcast %87 : vector<1x128xf32> to vector<16x128xf32>
    %90 = arith.mulf %88, %89 : vector<16x128xf32>
    %91 = arith.addf %85, %90 : vector<16x128xf32>
    %92 = vector.extract_strided_slice %34 {offsets = [0, 9], sizes = [16, 1], strides = [1, 1]} : vector<16x16xf32> to vector<16x1xf32>
    %93 = vector.extract_strided_slice %33 {offsets = [9, 0], sizes = [1, 128], strides = [1, 1]} : vector<16x128xf32> to vector<1x128xf32>
    %94 = vector.broadcast %92 : vector<16x1xf32> to vector<16x128xf32>
    %95 = vector.broadcast %93 : vector<1x128xf32> to vector<16x128xf32>
    %96 = arith.mulf %94, %95 : vector<16x128xf32>
    %97 = arith.addf %91, %96 : vector<16x128xf32>
    %98 = vector.extract_strided_slice %34 {offsets = [0, 10], sizes = [16, 1], strides = [1, 1]} : vector<16x16xf32> to vector<16x1xf32>
    %99 = vector.extract_strided_slice %33 {offsets = [10, 0], sizes = [1, 128], strides = [1, 1]} : vector<16x128xf32> to vector<1x128xf32>
    %100 = vector.broadcast %98 : vector<16x1xf32> to vector<16x128xf32>
    %101 = vector.broadcast %99 : vector<1x128xf32> to vector<16x128xf32>
    %102 = arith.mulf %100, %101 : vector<16x128xf32>
    %103 = arith.addf %97, %102 : vector<16x128xf32>
    %104 = vector.extract_strided_slice %34 {offsets = [0, 11], sizes = [16, 1], strides = [1, 1]} : vector<16x16xf32> to vector<16x1xf32>
    %105 = vector.extract_strided_slice %33 {offsets = [11, 0], sizes = [1, 128], strides = [1, 1]} : vector<16x128xf32> to vector<1x128xf32>
    %106 = vector.broadcast %104 : vector<16x1xf32> to vector<16x128xf32>
    %107 = vector.broadcast %105 : vector<1x128xf32> to vector<16x128xf32>
    %108 = arith.mulf %106, %107 : vector<16x128xf32>
    %109 = arith.addf %103, %108 : vector<16x128xf32>
    %110 = vector.extract_strided_slice %34 {offsets = [0, 12], sizes = [16, 1], strides = [1, 1]} : vector<16x16xf32> to vector<16x1xf32>
    %111 = vector.extract_strided_slice %33 {offsets = [12, 0], sizes = [1, 128], strides = [1, 1]} : vector<16x128xf32> to vector<1x128xf32>
    %112 = vector.broadcast %110 : vector<16x1xf32> to vector<16x128xf32>
    %113 = vector.broadcast %111 : vector<1x128xf32> to vector<16x128xf32>
    %114 = arith.mulf %112, %113 : vector<16x128xf32>
    %115 = arith.addf %109, %114 : vector<16x128xf32>
    %116 = vector.extract_strided_slice %34 {offsets = [0, 13], sizes = [16, 1], strides = [1, 1]} : vector<16x16xf32> to vector<16x1xf32>
    %117 = vector.extract_strided_slice %33 {offsets = [13, 0], sizes = [1, 128], strides = [1, 1]} : vector<16x128xf32> to vector<1x128xf32>
    %118 = vector.broadcast %116 : vector<16x1xf32> to vector<16x128xf32>
    %119 = vector.broadcast %117 : vector<1x128xf32> to vector<16x128xf32>
    %120 = arith.mulf %118, %119 : vector<16x128xf32>
    %121 = arith.addf %115, %120 : vector<16x128xf32>
    %122 = vector.extract_strided_slice %34 {offsets = [0, 14], sizes = [16, 1], strides = [1, 1]} : vector<16x16xf32> to vector<16x1xf32>
    %123 = vector.extract_strided_slice %33 {offsets = [14, 0], sizes = [1, 128], strides = [1, 1]} : vector<16x128xf32> to vector<1x128xf32>
    %124 = vector.broadcast %122 : vector<16x1xf32> to vector<16x128xf32>
    %125 = vector.broadcast %123 : vector<1x128xf32> to vector<16x128xf32>
    %126 = arith.mulf %124, %125 : vector<16x128xf32>
    %127 = arith.addf %121, %126 : vector<16x128xf32>
    %128 = vector.extract_strided_slice %34 {offsets = [0, 15], sizes = [16, 1], strides = [1, 1]} : vector<16x16xf32> to vector<16x1xf32>
    %129 = vector.extract_strided_slice %33 {offsets = [15, 0], sizes = [1, 128], strides = [1, 1]} : vector<16x128xf32> to vector<1x128xf32>
    %130 = vector.broadcast %128 : vector<16x1xf32> to vector<16x128xf32>
    %131 = vector.broadcast %129 : vector<1x128xf32> to vector<16x128xf32>
    %132 = arith.mulf %130, %131 : vector<16x128xf32>
    %133 = arith.addf %127, %132 : vector<16x128xf32>
    %cst_10 = arith.constant 0.000000e+00 : f32
    %134 = vector.broadcast %cst_10 : f32 to vector<16x128xf32>
    %135 = arith.cmpf oge, %133, %134 : vector<16x128xf32>
    %cst_11 = arith.constant 0.00999999977 : f32
    %136 = vector.broadcast %cst_11 : f32 to vector<16x128xf32>
    %137 = arith.mulf %136, %133 : vector<16x128xf32>
    %138 = arith.select %135, %133, %137 : vector<16x128xi1>, vector<16x128xf32>
    %c0_12 = arith.constant 0 : index
    %c0_13 = arith.constant 0 : index
    %139 = vector.load %arg6[%c0_12, %c0_13] : memref<2x16xf32, #tpu.memory_space<vmem>>, vector<2x16xf32>
    %c0_14 = arith.constant 0 : index
    %c0_15 = arith.constant 0 : index
    %140 = vector.load %arg7[%c0_14, %c0_15] : memref<2x1xf32, #tpu.memory_space<vmem>>, vector<2x1xf32>
    %141 = vector.shape_cast %140 : vector<2x1xf32> to vector<2x1xf32>
    %142 = vector.broadcast %141 : vector<2x1xf32> to vector<2x128xf32>
    %143 = vector.extract_strided_slice %139 {offsets = [0, 0], sizes = [2, 1], strides = [1, 1]} : vector<2x16xf32> to vector<2x1xf32>
    %144 = vector.extract_strided_slice %138 {offsets = [0, 0], sizes = [1, 128], strides = [1, 1]} : vector<16x128xf32> to vector<1x128xf32>
    %145 = vector.broadcast %143 : vector<2x1xf32> to vector<2x128xf32>
    %146 = vector.broadcast %144 : vector<1x128xf32> to vector<2x128xf32>
    %147 = arith.mulf %145, %146 : vector<2x128xf32>
    %148 = arith.addf %142, %147 : vector<2x128xf32>
    %149 = vector.extract_strided_slice %139 {offsets = [0, 1], sizes = [2, 1], strides = [1, 1]} : vector<2x16xf32> to vector<2x1xf32>
    %150 = vector.extract_strided_slice %138 {offsets = [1, 0], sizes = [1, 128], strides = [1, 1]} : vector<16x128xf32> to vector<1x128xf32>
    %151 = vector.broadcast %149 : vector<2x1xf32> to vector<2x128xf32>
    %152 = vector.broadcast %150 : vector<1x128xf32> to vector<2x128xf32>
    %153 = arith.mulf %151, %152 : vector<2x128xf32>
    %154 = arith.addf %148, %153 : vector<2x128xf32>
    %155 = vector.extract_strided_slice %139 {offsets = [0, 2], sizes = [2, 1], strides = [1, 1]} : vector<2x16xf32> to vector<2x1xf32>
    %156 = vector.extract_strided_slice %138 {offsets = [2, 0], sizes = [1, 128], strides = [1, 1]} : vector<16x128xf32> to vector<1x128xf32>
    %157 = vector.broadcast %155 : vector<2x1xf32> to vector<2x128xf32>
    %158 = vector.broadcast %156 : vector<1x128xf32> to vector<2x128xf32>
    %159 = arith.mulf %157, %158 : vector<2x128xf32>
    %160 = arith.addf %154, %159 : vector<2x128xf32>
    %161 = vector.extract_strided_slice %139 {offsets = [0, 3], sizes = [2, 1], strides = [1, 1]} : vector<2x16xf32> to vector<2x1xf32>
    %162 = vector.extract_strided_slice %138 {offsets = [3, 0], sizes = [1, 128], strides = [1, 1]} : vector<16x128xf32> to vector<1x128xf32>
    %163 = vector.broadcast %161 : vector<2x1xf32> to vector<2x128xf32>
    %164 = vector.broadcast %162 : vector<1x128xf32> to vector<2x128xf32>
    %165 = arith.mulf %163, %164 : vector<2x128xf32>
    %166 = arith.addf %160, %165 : vector<2x128xf32>
    %167 = vector.extract_strided_slice %139 {offsets = [0, 4], sizes = [2, 1], strides = [1, 1]} : vector<2x16xf32> to vector<2x1xf32>
    %168 = vector.extract_strided_slice %138 {offsets = [4, 0], sizes = [1, 128], strides = [1, 1]} : vector<16x128xf32> to vector<1x128xf32>
    %169 = vector.broadcast %167 : vector<2x1xf32> to vector<2x128xf32>
    %170 = vector.broadcast %168 : vector<1x128xf32> to vector<2x128xf32>
    %171 = arith.mulf %169, %170 : vector<2x128xf32>
    %172 = arith.addf %166, %171 : vector<2x128xf32>
    %173 = vector.extract_strided_slice %139 {offsets = [0, 5], sizes = [2, 1], strides = [1, 1]} : vector<2x16xf32> to vector<2x1xf32>
    %174 = vector.extract_strided_slice %138 {offsets = [5, 0], sizes = [1, 128], strides = [1, 1]} : vector<16x128xf32> to vector<1x128xf32>
    %175 = vector.broadcast %173 : vector<2x1xf32> to vector<2x128xf32>
    %176 = vector.broadcast %174 : vector<1x128xf32> to vector<2x128xf32>
    %177 = arith.mulf %175, %176 : vector<2x128xf32>
    %178 = arith.addf %172, %177 : vector<2x128xf32>
    %179 = vector.extract_strided_slice %139 {offsets = [0, 6], sizes = [2, 1], strides = [1, 1]} : vector<2x16xf32> to vector<2x1xf32>
    %180 = vector.extract_strided_slice %138 {offsets = [6, 0], sizes = [1, 128], strides = [1, 1]} : vector<16x128xf32> to vector<1x128xf32>
    %181 = vector.broadcast %179 : vector<2x1xf32> to vector<2x128xf32>
    %182 = vector.broadcast %180 : vector<1x128xf32> to vector<2x128xf32>
    %183 = arith.mulf %181, %182 : vector<2x128xf32>
    %184 = arith.addf %178, %183 : vector<2x128xf32>
    %185 = vector.extract_strided_slice %139 {offsets = [0, 7], sizes = [2, 1], strides = [1, 1]} : vector<2x16xf32> to vector<2x1xf32>
    %186 = vector.extract_strided_slice %138 {offsets = [7, 0], sizes = [1, 128], strides = [1, 1]} : vector<16x128xf32> to vector<1x128xf32>
    %187 = vector.broadcast %185 : vector<2x1xf32> to vector<2x128xf32>
    %188 = vector.broadcast %186 : vector<1x128xf32> to vector<2x128xf32>
    %189 = arith.mulf %187, %188 : vector<2x128xf32>
    %190 = arith.addf %184, %189 : vector<2x128xf32>
    %191 = vector.extract_strided_slice %139 {offsets = [0, 8], sizes = [2, 1], strides = [1, 1]} : vector<2x16xf32> to vector<2x1xf32>
    %192 = vector.extract_strided_slice %138 {offsets = [8, 0], sizes = [1, 128], strides = [1, 1]} : vector<16x128xf32> to vector<1x128xf32>
    %193 = vector.broadcast %191 : vector<2x1xf32> to vector<2x128xf32>
    %194 = vector.broadcast %192 : vector<1x128xf32> to vector<2x128xf32>
    %195 = arith.mulf %193, %194 : vector<2x128xf32>
    %196 = arith.addf %190, %195 : vector<2x128xf32>
    %197 = vector.extract_strided_slice %139 {offsets = [0, 9], sizes = [2, 1], strides = [1, 1]} : vector<2x16xf32> to vector<2x1xf32>
    %198 = vector.extract_strided_slice %138 {offsets = [9, 0], sizes = [1, 128], strides = [1, 1]} : vector<16x128xf32> to vector<1x128xf32>
    %199 = vector.broadcast %197 : vector<2x1xf32> to vector<2x128xf32>
    %200 = vector.broadcast %198 : vector<1x128xf32> to vector<2x128xf32>
    %201 = arith.mulf %199, %200 : vector<2x128xf32>
    %202 = arith.addf %196, %201 : vector<2x128xf32>
    %203 = vector.extract_strided_slice %139 {offsets = [0, 10], sizes = [2, 1], strides = [1, 1]} : vector<2x16xf32> to vector<2x1xf32>
    %204 = vector.extract_strided_slice %138 {offsets = [10, 0], sizes = [1, 128], strides = [1, 1]} : vector<16x128xf32> to vector<1x128xf32>
    %205 = vector.broadcast %203 : vector<2x1xf32> to vector<2x128xf32>
    %206 = vector.broadcast %204 : vector<1x128xf32> to vector<2x128xf32>
    %207 = arith.mulf %205, %206 : vector<2x128xf32>
    %208 = arith.addf %202, %207 : vector<2x128xf32>
    %209 = vector.extract_strided_slice %139 {offsets = [0, 11], sizes = [2, 1], strides = [1, 1]} : vector<2x16xf32> to vector<2x1xf32>
    %210 = vector.extract_strided_slice %138 {offsets = [11, 0], sizes = [1, 128], strides = [1, 1]} : vector<16x128xf32> to vector<1x128xf32>
    %211 = vector.broadcast %209 : vector<2x1xf32> to vector<2x128xf32>
    %212 = vector.broadcast %210 : vector<1x128xf32> to vector<2x128xf32>
    %213 = arith.mulf %211, %212 : vector<2x128xf32>
    %214 = arith.addf %208, %213 : vector<2x128xf32>
    %215 = vector.extract_strided_slice %139 {offsets = [0, 12], sizes = [2, 1], strides = [1, 1]} : vector<2x16xf32> to vector<2x1xf32>
    %216 = vector.extract_strided_slice %138 {offsets = [12, 0], sizes = [1, 128], strides = [1, 1]} : vector<16x128xf32> to vector<1x128xf32>
    %217 = vector.broadcast %215 : vector<2x1xf32> to vector<2x128xf32>
    %218 = vector.broadcast %216 : vector<1x128xf32> to vector<2x128xf32>
    %219 = arith.mulf %217, %218 : vector<2x128xf32>
    %220 = arith.addf %214, %219 : vector<2x128xf32>
    %221 = vector.extract_strided_slice %139 {offsets = [0, 13], sizes = [2, 1], strides = [1, 1]} : vector<2x16xf32> to vector<2x1xf32>
    %222 = vector.extract_strided_slice %138 {offsets = [13, 0], sizes = [1, 128], strides = [1, 1]} : vector<16x128xf32> to vector<1x128xf32>
    %223 = vector.broadcast %221 : vector<2x1xf32> to vector<2x128xf32>
    %224 = vector.broadcast %222 : vector<1x128xf32> to vector<2x128xf32>
    %225 = arith.mulf %223, %224 : vector<2x128xf32>
    %226 = arith.addf %220, %225 : vector<2x128xf32>
    %227 = vector.extract_strided_slice %139 {offsets = [0, 14], sizes = [2, 1], strides = [1, 1]} : vector<2x16xf32> to vector<2x1xf32>
    %228 = vector.extract_strided_slice %138 {offsets = [14, 0], sizes = [1, 128], strides = [1, 1]} : vector<16x128xf32> to vector<1x128xf32>
    %229 = vector.broadcast %227 : vector<2x1xf32> to vector<2x128xf32>
    %230 = vector.broadcast %228 : vector<1x128xf32> to vector<2x128xf32>
    %231 = arith.mulf %229, %230 : vector<2x128xf32>
    %232 = arith.addf %226, %231 : vector<2x128xf32>
    %233 = vector.extract_strided_slice %139 {offsets = [0, 15], sizes = [2, 1], strides = [1, 1]} : vector<2x16xf32> to vector<2x1xf32>
    %234 = vector.extract_strided_slice %138 {offsets = [15, 0], sizes = [1, 128], strides = [1, 1]} : vector<16x128xf32> to vector<1x128xf32>
    %235 = vector.broadcast %233 : vector<2x1xf32> to vector<2x128xf32>
    %236 = vector.broadcast %234 : vector<1x128xf32> to vector<2x128xf32>
    %237 = arith.mulf %235, %236 : vector<2x128xf32>
    %238 = arith.addf %232, %237 : vector<2x128xf32>
    %239 = vector.extract_strided_slice %238 {offsets = [0, 0], sizes = [1, 128], strides = [1, 1]} : vector<2x128xf32> to vector<1x128xf32>
    %240 = vector.extract_strided_slice %238 {offsets = [1, 0], sizes = [1, 128], strides = [1, 1]} : vector<2x128xf32> to vector<1x128xf32>
    %241 = arith.maximumf %239, %240 : vector<1x128xf32>
    %242 = vector.broadcast %241 : vector<1x128xf32> to vector<2x128xf32>
    %243 = arith.subf %238, %242 : vector<2x128xf32>
    %244 = math.exp %243 : vector<2x128xf32>
    %245 = vector.extract_strided_slice %244 {offsets = [0, 0], sizes = [1, 128], strides = [1, 1]} : vector<2x128xf32> to vector<1x128xf32>
    %246 = vector.extract_strided_slice %244 {offsets = [1, 0], sizes = [1, 128], strides = [1, 1]} : vector<2x128xf32> to vector<1x128xf32>
    %247 = arith.addf %245, %246 : vector<1x128xf32>
    %248 = tpu.reciprocal %247 : vector<1x128xf32> -> vector<1x128xf32>
    %249 = vector.broadcast %248 : vector<1x128xf32> to vector<2x128xf32>
    %250 = arith.mulf %244, %249 : vector<2x128xf32>
    %c0_16 = arith.constant 0 : index
    %c0_17 = arith.constant 0 : index
    %251 = vector.load %arg8[%c0_16, %c0_17] : memref<2x128xf32, #tpu.memory_space<vmem>>, vector<2x128xf32>
    tpu.vector_store %arg8[%c0_16, %c0_17], %250 {strides = array<i32>} : memref<2x128xf32, #tpu.memory_space<vmem>>, vector<2x128xf32>,
    return
  }
  func.func @transform_0(%arg0: i32) -> (i32, i32) {
    %c0_i32 = arith.constant 0 : i32
    %c0_i32_0 = arith.constant 0 : i32
    return %c0_i32, %arg0 : i32, i32
  }
  func.func @transform_1(%arg0: i32) -> (i32, i32) {
    %c0_i32 = arith.constant 0 : i32
    %c0_i32_0 = arith.constant 0 : i32
    %c0_i32_1 = arith.constant 0 : i32
    return %c0_i32, %c0_i32_0 : i32, i32
  }
  func.func @transform_2(%arg0: i32) -> (i32, i32) {
    %c0_i32 = arith.constant 0 : i32
    %c0_i32_0 = arith.constant 0 : i32
    %c0_i32_1 = arith.constant 0 : i32
    return %c0_i32, %c0_i32_0 : i32, i32
  }
  func.func @transform_3(%arg0: i32) -> (i32, i32) {
    %c0_i32 = arith.constant 0 : i32
    %c0_i32_0 = arith.constant 0 : i32
    %c0_i32_1 = arith.constant 0 : i32
    return %c0_i32, %c0_i32_0 : i32, i32
  }
  func.func @transform_4(%arg0: i32) -> (i32, i32) {
    %c0_i32 = arith.constant 0 : i32
    %c0_i32_0 = arith.constant 0 : i32
    %c0_i32_1 = arith.constant 0 : i32
    return %c0_i32, %c0_i32_0 : i32, i32
  }
  func.func @transform_5(%arg0: i32) -> (i32, i32) {
    %c0_i32 = arith.constant 0 : i32
    %c0_i32_0 = arith.constant 0 : i32
    %c0_i32_1 = arith.constant 0 : i32
    return %c0_i32, %c0_i32_0 : i32, i32
  }
  func.func @transform_6(%arg0: i32) -> (i32, i32) {
    %c0_i32 = arith.constant 0 : i32
    %c0_i32_0 = arith.constant 0 : i32
    %c0_i32_1 = arith.constant 0 : i32
    return %c0_i32, %c0_i32_0 : i32, i32
  }
  func.func @transform_7(%arg0: i32) -> (i32, i32) {
    %c0_i32 = arith.constant 0 : i32
    %c0_i32_0 = arith.constant 0 : i32
    return %c0_i32, %arg0 : i32, i32
  }
}

</mosaic_0001>

<llo_original>
// kernel: tpu_custom_call.1
$region0: #{tpu_custom_call.1}
  #allocation0 [shape = 'u32[]', space=smem, size = 0x4, offset = 0x4, fixed_abs, tag = 'smem constant byte address 0x4 - core index']
  #allocation1 [shape = 'u32[72,128]{1,0:T(1,128)}', space=vmem, size = 0x9000, scoped, tag = 'internal scratch']
  %s0 = inlined_call_operand.vmem [shape: f32[4,384], index: 0, kind: input, shape index: {}]
  %s1 = inlined_call_operand.vmem [shape: f32[16,4], index: 1, kind: input, shape index: {}]
  %s2 = inlined_call_operand.vmem [shape: f32[16,1], index: 2, kind: input, shape index: {}]
  %s3 = inlined_call_operand.vmem [shape: f32[16,16], index: 3, kind: input, shape index: {}]
  %s4 = inlined_call_operand.vmem [shape: f32[16,1], index: 4, kind: input, shape index: {}]
  %s5 = inlined_call_operand.vmem [shape: f32[2,16], index: 5, kind: input, shape index: {}]
  %s6 = inlined_call_operand.vmem [shape: f32[2,1], index: 6, kind: input, shape index: {}]
  %s7 = inlined_call_operand.hbm [shape: f32[2,384], index: 7, kind: output, shape index: {}]
  %s8 = sld [smem:[#allocation0]]
  $region61: #{tpu_custom_call.1} parent=0
    _
  %s10 = ssub.s32 1, %s8
  %s11 = scalar_select 0, %s10, %s8
  $region1: #{tpu_custom_call.1} parent=0
    #allocation2 [shape = 'u8[2048]{0}', space=vmem, size = 0x800, scoped, tag = 'output window, operand 0']
    #allocation3 [shape = 's32[2]{0}', space=sflag, size = 0x8, scoped, tag = 'scoped memory for tpu_custom_call.1']
    %12 = vsyncpa [#allocation3], 0
    %s13 = scalar_lea.sflag [#allocation3], 1
    %14 = vsyncpa %s13, 0
    loop: start=0, step=1, limit=5
    $region2: #{tpu_custom_call.1} parent=1 // loop_pre_header
      _
    $region3: #{tpu_custom_call.1} parent=1 // loop_header
      %s16 = sphi 0, %s20
      %p17 = scmp.ge.s32.totalorder %s16, 5
      %s26 = sphi 0, %s28
      %s29 = sphi 0, %s26
      %s30 = sphi 0, %s29
      %s46 = sphi 0, %s30
      %s50 = sphi 0, %s50
      %s52 = sphi 0, %s50
      %s53 = sphi 0, %s52
      %s67 = sphi 0, %s53
      %s71 = sphi 0, %s71
      %s73 = sphi 0, %s71
      %s74 = sphi 0, %s73
      %s88 = sphi 0, %s74
      %s92 = sphi 0, %s92
      %s94 = sphi 0, %s92
      %s95 = sphi 0, %s94
      %s109 = sphi 0, %s95
      %s113 = sphi 0, %s113
      %s115 = sphi 0, %s113
      %s116 = sphi 0, %s115
      %s130 = sphi 0, %s116
      %s134 = sphi 0, %s134
      %s136 = sphi 0, %s134
      %s137 = sphi 0, %s136
      %s151 = sphi 0, %s137
      %s155 = sphi 0, %s155
      %s157 = sphi 0, %s155
      %s158 = sphi 0, %s157
      %s172 = sphi 0, %s158
      %s178 = sphi 0, %s180
      %s181 = sphi 0, %s178
      %s182 = sphi 0, %s181
      %s198 = sphi 0, %s182
    $region4: #{tpu_custom_call.1} parent=1 // loop_header_branch
      %19 = sbr.rel (%p17) target = $region8
    $region5: #{tpu_custom_call.1} parent=1 // loop_body
      %s21 = ssub.s32 %s16, 1
      %s22 = ssub.s32 %s16, 2
      %s23 = sadd.s32 %s16, 1
      %s24 = ssub.s32 %s16, %s23
      %p25 = scmp.eq.s32.totalorder %s24, 0
      %s27 = sadd.s32 %s26, 1
      %s28 = scalar_select %p25, %s26, %s27
      %p31 = pneg %p25
      %p32 = scmp.eq.s32.totalorder %s16, 2
      %p33 = por %p31, %p32
      %p34 = scmp.ne.s32.totalorder %s26, %s29
      %p35 = scmp.eq.s32.totalorder %s16, 0
      %p36 = por %p34, %p35
      %p37 = scmp.ne.s32.totalorder %s26, %s29
      %p38 = scmp.eq.s32.totalorder %s21, 2
      %p39 = por %p37, %p38
      %p40 = scmp.ne.s32.totalorder %s29, %s30
      %p41 = scmp.eq.s32.totalorder %s21, 0
      %p42 = por %p40, %p41
      %p43 = scmp.ne.s32.totalorder %s29, %s30
      %p44 = scmp.eq.s32.totalorder %s22, 2
      %p45 = por %p43, %p44
      %p47 = scmp.ne.s32.totalorder %s30, %s46
      %p48 = scmp.eq.s32.totalorder %s22, 0
      %p49 = por %p47, %p48
      %s51 = sadd.s32 %s50, 1
      %p54 = scmp.eq.s32.totalorder %s16, 2
      %p55 = scmp.ne.s32.totalorder %s50, %s52
      %p56 = scmp.eq.s32.totalorder %s16, 0
      %p57 = por %p55, %p56
      %p58 = scmp.ne.s32.totalorder %s50, %s52
      %p59 = scmp.eq.s32.totalorder %s21, 2
      %p60 = por %p58, %p59
      %p61 = scmp.ne.s32.totalorder %s52, %s53
      %p62 = scmp.eq.s32.totalorder %s21, 0
      %p63 = por %p61, %p62
      %p64 = scmp.ne.s32.totalorder %s52, %s53
      %p65 = scmp.eq.s32.totalorder %s22, 2
      %p66 = por %p64, %p65
      %p68 = scmp.ne.s32.totalorder %s53, %s67
      %p69 = scmp.eq.s32.totalorder %s22, 0
      %p70 = por %p68, %p69
      %s72 = sadd.s32 %s71, 1
      %p75 = scmp.eq.s32.totalorder %s16, 2
      %p76 = scmp.ne.s32.totalorder %s71, %s73
      %p77 = scmp.eq.s32.totalorder %s16, 0
      %p78 = por %p76, %p77
      %p79 = scmp.ne.s32.totalorder %s71, %s73
      %p80 = scmp.eq.s32.totalorder %s21, 2
      %p81 = por %p79, %p80
      %p82 = scmp.ne.s32.totalorder %s73, %s74
      %p83 = scmp.eq.s32.totalorder %s21, 0
      %p84 = por %p82, %p83
      %p85 = scmp.ne.s32.totalorder %s73, %s74
      %p86 = scmp.eq.s32.totalorder %s22, 2
      %p87 = por %p85, %p86
      %p89 = scmp.ne.s32.totalorder %s74, %s88
      %p90 = scmp.eq.s32.totalorder %s22, 0
      %p91 = por %p89, %p90
      %s93 = sadd.s32 %s92, 1
      %p96 = scmp.eq.s32.totalorder %s16, 2
      %p97 = scmp.ne.s32.totalorder %s92, %s94
      %p98 = scmp.eq.s32.totalorder %s16, 0
      %p99 = por %p97, %p98
      %p100 = scmp.ne.s32.totalorder %s92, %s94
      %p101 = scmp.eq.s32.totalorder %s21, 2
      %p102 = por %p100, %p101
      %p103 = scmp.ne.s32.totalorder %s94, %s95
      %p104 = scmp.eq.s32.totalorder %s21, 0
      %p105 = por %p103, %p104
      %p106 = scmp.ne.s32.totalorder %s94, %s95
      %p107 = scmp.eq.s32.totalorder %s22, 2
      %p108 = por %p106, %p107
      %p110 = scmp.ne.s32.totalorder %s95, %s109
      %p111 = scmp.eq.s32.totalorder %s22, 0
      %p112 = por %p110, %p111
      %s114 = sadd.s32 %s113, 1
      %p117 = scmp.eq.s32.totalorder %s16, 2
      %p118 = scmp.ne.s32.totalorder %s113, %s115
      %p119 = scmp.eq.s32.totalorder %s16, 0
      %p120 = por %p118, %p119
      %p121 = scmp.ne.s32.totalorder %s113, %s115
      %p122 = scmp.eq.s32.totalorder %s21, 2
      %p123 = por %p121, %p122
      %p124 = scmp.ne.s32.totalorder %s115, %s116
      %p125 = scmp.eq.s32.totalorder %s21, 0
      %p126 = por %p124, %p125
      %p127 = scmp.ne.s32.totalorder %s115, %s116
      %p128 = scmp.eq.s32.totalorder %s22, 2
      %p129 = por %p127, %p128
      %p131 = scmp.ne.s32.totalorder %s116, %s130
      %p132 = scmp.eq.s32.totalorder %s22, 0
      %p133 = por %p131, %p132
      %s135 = sadd.s32 %s134, 1
      %p138 = scmp.eq.s32.totalorder %s16, 2
      %p139 = scmp.ne.s32.totalorder %s134, %s136
      %p140 = scmp.eq.s32.totalorder %s16, 0
      %p141 = por %p139, %p140
      %p142 = scmp.ne.s32.totalorder %s134, %s136
      %p143 = scmp.eq.s32.totalorder %s21, 2
      %p144 = por %p142, %p143
      %p145 = scmp.ne.s32.totalorder %s136, %s137
      %p146 = scmp.eq.s32.totalorder %s21, 0
      %p147 = por %p145, %p146
      %p148 = scmp.ne.s32.totalorder %s136, %s137
      %p149 = scmp.eq.s32.totalorder %s22, 2
      %p150 = por %p148, %p149
      %p152 = scmp.ne.s32.totalorder %s137, %s151
      %p153 = scmp.eq.s32.totalorder %s22, 0
      %p154 = por %p152, %p153
      %s156 = sadd.s32 %s155, 1
      %p159 = scmp.eq.s32.totalorder %s16, 2
      %p160 = scmp.ne.s32.totalorder %s155, %s157
      %p161 = scmp.eq.s32.totalorder %s16, 0
      %p162 = por %p160, %p161
      %p163 = scmp.ne.s32.totalorder %s155, %s157
      %p164 = scmp.eq.s32.totalorder %s21, 2
      %p165 = por %p163, %p164
      %p166 = scmp.ne.s32.totalorder %s157, %s158
      %p167 = scmp.eq.s32.totalorder %s21, 0
      %p168 = por %p166, %p167
      %p169 = scmp.ne.s32.totalorder %s157, %s158
      %p170 = scmp.eq.s32.totalorder %s22, 2
      %p171 = por %p169, %p170
      %p173 = scmp.ne.s32.totalorder %s158, %s172
      %p174 = scmp.eq.s32.totalorder %s22, 0
      %p175 = por %p173, %p174
      %s176 = ssub.s32 %s16, %s23
      %p177 = scmp.eq.s32.totalorder %s176, 0
      %s179 = sadd.s32 %s178, 1
      %s180 = scalar_select %p177, %s178, %s179
      %p183 = pneg %p177
      %p184 = scmp.eq.s32.totalorder %s16, 2
      %p185 = por %p183, %p184
      %p186 = scmp.ne.s32.totalorder %s178, %s181
      %p187 = scmp.eq.s32.totalorder %s16, 0
      %p188 = por %p186, %p187
      %p189 = scmp.ne.s32.totalorder %s178, %s181
      %p190 = scmp.eq.s32.totalorder %s21, 2
      %p191 = por %p189, %p190
      %p192 = scmp.ne.s32.totalorder %s181, %s182
      %p193 = scmp.eq.s32.totalorder %s21, 0
      %p194 = por %p192, %p193
      %p195 = scmp.ne.s32.totalorder %s181, %s182
      %p196 = scmp.eq.s32.totalorder %s22, 2
      %p197 = por %p195, %p196
      %p199 = scmp.ne.s32.totalorder %s182, %s198
      %p200 = scmp.eq.s32.totalorder %s22, 0
      %p201 = por %p199, %p200
      %p202 = scmp.le.s32.totalorder 1, %s16
      %p203 = scmp.lt.s32.totalorder %s16, 4
      %p204 = pnand %p202, %p203
      %p205 = pneg %p204
      // Predicated region
      $region9: #{tpu_custom_call.1} parent=5 // pred_check
        _
      $region10: #{tpu_custom_call.1} parent=5 // pred_check_branch
        %207 = sbr.rel (%p204) target = $region12
      $region11: #{tpu_custom_call.1} parent=5 // pred_region
        %s208 = ssub.s32 %s16, 1
        // Predicated region
        $region13: #{tpu_custom_call.1} parent=11 // pred_check
          %p209 = pneg %p63
        $region14: #{tpu_custom_call.1} parent=11 // pred_check_branch
          %211 = sbr.rel (%p209) target = $region16
        $region15: #{tpu_custom_call.1} parent=11 // pred_region
          _
        $region16: #{tpu_custom_call.1} parent=11 // pred_fallthru
          _
        // Predicated region
        $region17: #{tpu_custom_call.1} parent=11 // pred_check
          %p212 = pneg %p84
        $region18: #{tpu_custom_call.1} parent=11 // pred_check_branch
          %214 = sbr.rel (%p212) target = $region20
        $region19: #{tpu_custom_call.1} parent=11 // pred_region
          _
        $region20: #{tpu_custom_call.1} parent=11 // pred_fallthru
          _
        // Predicated region
        $region21: #{tpu_custom_call.1} parent=11 // pred_check
          %p215 = pneg %p105
        $region22: #{tpu_custom_call.1} parent=11 // pred_check_branch
          %217 = sbr.rel (%p215) target = $region24
        $region23: #{tpu_custom_call.1} parent=11 // pred_region
          _
        $region24: #{tpu_custom_call.1} parent=11 // pred_fallthru
          _
        // Predicated region
        $region25: #{tpu_custom_call.1} parent=11 // pred_check
          %p218 = pneg %p126
        $region26: #{tpu_custom_call.1} parent=11 // pred_check_branch
          %220 = sbr.rel (%p218) target = $region28
        $region27: #{tpu_custom_call.1} parent=11 // pred_region
          _
        $region28: #{tpu_custom_call.1} parent=11 // pred_fallthru
          _
        // Predicated region
        $region29: #{tpu_custom_call.1} parent=11 // pred_check
          %p221 = pneg %p147
        $region30: #{tpu_custom_call.1} parent=11 // pred_check_branch
          %223 = sbr.rel (%p221) target = $region32
        $region31: #{tpu_custom_call.1} parent=11 // pred_region
          _
        $region32: #{tpu_custom_call.1} parent=11 // pred_fallthru
          _
        // Predicated region
        $region33: #{tpu_custom_call.1} parent=11 // pred_check
          %p224 = pneg %p168
        $region34: #{tpu_custom_call.1} parent=11 // pred_check_branch
          %226 = sbr.rel (%p224) target = $region36
        $region35: #{tpu_custom_call.1} parent=11 // pred_region
          _
        $region36: #{tpu_custom_call.1} parent=11 // pred_fallthru
          _
      $region12: #{tpu_custom_call.1} parent=5 // pred_fallthru
        _
      %p227 = scmp.lt.s32.totalorder %s16, 3
      // Predicated region
      $region37: #{tpu_custom_call.1} parent=5 // pred_check
        %p228 = pneg %p227
      $region38: #{tpu_custom_call.1} parent=5 // pred_check_branch
        %230 = sbr.rel (%p228) target = $region40
      $region39: #{tpu_custom_call.1} parent=5 // pred_region
        // Predicated region
        $region41: #{tpu_custom_call.1} parent=39 // pred_check
          %p231 = pneg %p36
        $region42: #{tpu_custom_call.1} parent=39 // pred_check_branch
          %233 = sbr.rel (%p231) target = $region44
        $region43: #{tpu_custom_call.1} parent=39 // pred_region
          %p234 = scmp.lt.s32.totalorder %s16, 2
          %s235 = scalar_select %p234, %s16, 2
          %s236 = smul.addr %s235, 4
          %s237 = scalar_lea.vmem %s0, %s236
        $region44: #{tpu_custom_call.1} parent=39 // pred_fallthru
          _
      $region40: #{tpu_custom_call.1} parent=5 // pred_fallthru
        _
      %p238 = scmp.le.s32.totalorder 1, %s16
      %p239 = scmp.lt.s32.totalorder %s16, 4
      %p240 = pnand %p238, %p239
      %p241 = pneg %p240
      // Predicated region
      $region45: #{tpu_custom_call.1} parent=5 // pred_check
        _
      $region46: #{tpu_custom_call.1} parent=5 // pred_check_branch
        %243 = sbr.rel (%p240) target = $region48
      $region47: #{tpu_custom_call.1} parent=5 // pred_region
        %s244 = ssub.s32 %s16, 1
        %p245 = scmp.lt.s32.totalorder %s21, 2
        %s246 = scalar_select %p245, %s21, 2
        %s247 = smul.addr %s246, 4
        %s248 = scalar_lea.vmem %s0, %s247
        %p249 = pneg %p42
        %p250 = pneg %p39
        %p251 = pneg %p63
        %p252 = pneg %p60
        %p253 = pneg %p84
        %p254 = pneg %p81
        %p255 = pneg %p105
        %p256 = pneg %p102
        %p257 = pneg %p126
        %p258 = pneg %p123
        %p259 = pneg %p147
        %p260 = pneg %p144
        %p261 = pneg %p168
        %p262 = pneg %p165
        %p263 = pneg %p194
        %p264 = pneg %p191
        %s265 = sand.u32 %s181, 1
        %s266 = scalar_lea.sflag [#allocation3], %s265
        %s267 = sand.u32 %s181, 1
        %s268 = smul.addr %s267, 2
        %s269 = scalar_lea.vmem [#allocation2], %s268
        %p270 = scmp.lt.s32.totalorder %s21, 2
        %s271 = scalar_select %p270, %s21, 2
        %s272 = smul.addr %s271, 4
        %s273 = scalar_lea.vmem %s0, %s272
        %v274 = vld [vmem:[%s273] sm:$0xf]
        %v275 = vld [vmem:[%s1] sm:$0xff]
        %v276 = vld [vmem:[%s1 + $0x8] sm:$0xff]
        %v277 = vld [vmem:[%s2] sm:$0xff]
        %v278 = vld [vmem:[%s2 + $0x8] sm:$0xff]
        %280 = vset.pattern.permute.xlu0 0
        %281 = vperm.xlu0 %280, %v277
        %v282 = vpop.permute.xlu0 %281
        %285 = vset.pattern.permute.xlu0 0
        %286 = vperm.xlu0 %285, %v278
        %v287 = vpop.permute.xlu0 %286
        %290 = vset.pattern.permute.xlu0 0
        %291 = vperm.xlu0 %290, %v275
        %v292 = vpop.permute.xlu0 %291
        %295 = vset.pattern.permute.xlu0 0
        %296 = vperm.xlu0 %295, %v276
        %v297 = vpop.permute.xlu0 %296
        %v299 = vperm.slane %v274, 0
        %v300 = vmul.f32 %v292, %v299
        %v301 = vmul.f32 %v297, %v299
        %v302 = vadd.f32 %v282, %v300
        %v303 = vadd.f32 %v287, %v301
        %304 = vset.pattern.permute.xlu0 1
        %305 = vperm.xlu0 %304, %v275
        %v306 = vpop.permute.xlu0 %305
        %308 = vset.pattern.permute.xlu0 1
        %309 = vperm.xlu0 %308, %v276
        %v310 = vpop.permute.xlu0 %309
        %v312 = vperm.slane %v274, 1
        %v313 = vmul.f32 %v306, %v312
        %v314 = vmul.f32 %v310, %v312
        %v315 = vadd.f32 %v302, %v313
        %v316 = vadd.f32 %v303, %v314
        %317 = vset.pattern.permute.xlu0 2
        %318 = vperm.xlu0 %317, %v275
        %v319 = vpop.permute.xlu0 %318
        %321 = vset.pattern.permute.xlu0 2
        %322 = vperm.xlu0 %321, %v276
        %v323 = vpop.permute.xlu0 %322
        %v325 = vperm.slane %v274, 2
        %v326 = vmul.f32 %v319, %v325
        %v327 = vmul.f32 %v323, %v325
        %v328 = vadd.f32 %v315, %v326
        %v329 = vadd.f32 %v316, %v327
        %330 = vset.pattern.permute.xlu0 3
        %331 = vperm.xlu0 %330, %v275
        %v332 = vpop.permute.xlu0 %331
        %334 = vset.pattern.permute.xlu0 3
        %335 = vperm.xlu0 %334, %v276
        %v336 = vpop.permute.xlu0 %335
        %v338 = vperm.slane %v274, 3
        %v339 = vmul.f32 %v332, %v338
        %v340 = vmul.f32 %v336, %v338
        %v341 = vadd.f32 %v328, %v339
        %v342 = vadd.f32 %v329, %v340
        %vm343 = vcmp.ge.f32.partialorder %v341, 0.0
        %vm344 = vcmp.ge.f32.partialorder %v342, 0.0
        %v345 = vmul.f32 %v341, 0.01
        %v346 = vmul.f32 %v342, 0.01
        %v347 = vsel %vm343, %v341, %v345
        %v348 = vsel %vm344, %v342, %v346
        %v349 = vld [vmem:[%s3] sm:$0xff]
        %v350 = vld [vmem:[%s3 + $0x8] sm:$0xff]
        %v351 = vld [vmem:[%s4] sm:$0xff]
        %v352 = vld [vmem:[%s4 + $0x8] sm:$0xff]
        %354 = vset.pattern.permute.xlu0 0
        %355 = vperm.xlu0 %354, %v351
        %v356 = vpop.permute.xlu0 %355
        %359 = vset.pattern.permute.xlu0 0
        %360 = vperm.xlu0 %359, %v352
        %v361 = vpop.permute.xlu0 %360
        %364 = vset.pattern.permute.xlu0 0
        %365 = vperm.xlu0 %364, %v349
        %v366 = vpop.permute.xlu0 %365
        %369 = vset.pattern.permute.xlu0 0
        %370 = vperm.xlu0 %369, %v350
        %v371 = vpop.permute.xlu0 %370
        %v373 = vperm.slane %v347, 0
        %v374 = vmul.f32 %v366, %v373
        %v375 = vmul.f32 %v371, %v373
        %v376 = vadd.f32 %v356, %v374
        %v377 = vadd.f32 %v361, %v375
        %378 = vset.pattern.permute.xlu0 1
        %379 = vperm.xlu0 %378, %v349
        %v380 = vpop.permute.xlu0 %379
        %382 = vset.pattern.permute.xlu0 1
        %383 = vperm.xlu0 %382, %v350
        %v384 = vpop.permute.xlu0 %383
        %v386 = vperm.slane %v347, 1
        %v387 = vmul.f32 %v380, %v386
        %v388 = vmul.f32 %v384, %v386
        %v389 = vadd.f32 %v376, %v387
        %v390 = vadd.f32 %v377, %v388
        %391 = vset.pattern.permute.xlu0 2
        %392 = vperm.xlu0 %391, %v349
        %v393 = vpop.permute.xlu0 %392
        %395 = vset.pattern.permute.xlu0 2
        %396 = vperm.xlu0 %395, %v350
        %v397 = vpop.permute.xlu0 %396
        %v399 = vperm.slane %v347, 2
        %v400 = vmul.f32 %v393, %v399
        %v401 = vmul.f32 %v397, %v399
        %v402 = vadd.f32 %v389, %v400
        %v403 = vadd.f32 %v390, %v401
        %404 = vset.pattern.permute.xlu0 3
        %405 = vperm.xlu0 %404, %v349
        %v406 = vpop.permute.xlu0 %405
        %408 = vset.pattern.permute.xlu0 3
        %409 = vperm.xlu0 %408, %v350
        %v410 = vpop.permute.xlu0 %409
        %v412 = vperm.slane %v347, 3
        %v413 = vmul.f32 %v406, %v412
        %v414 = vmul.f32 %v410, %v412
        %v415 = vadd.f32 %v402, %v413
        %v416 = vadd.f32 %v403, %v414
        %417 = vset.pattern.permute.xlu0 4
        %418 = vperm.xlu0 %417, %v349
        %v419 = vpop.permute.xlu0 %418
        %421 = vset.pattern.permute.xlu0 4
        %422 = vperm.xlu0 %421, %v350
        %v423 = vpop.permute.xlu0 %422
        %v425 = vperm.slane %v347, 4
        %v426 = vmul.f32 %v419, %v425
        %v427 = vmul.f32 %v423, %v425
        %v428 = vadd.f32 %v415, %v426
        %v429 = vadd.f32 %v416, %v427
        %430 = vset.pattern.permute.xlu0 5
        %431 = vperm.xlu0 %430, %v349
        %v432 = vpop.permute.xlu0 %431
        %434 = vset.pattern.permute.xlu0 5
        %435 = vperm.xlu0 %434, %v350
        %v436 = vpop.permute.xlu0 %435
        %v438 = vperm.slane %v347, 5
        %v439 = vmul.f32 %v432, %v438
        %v440 = vmul.f32 %v436, %v438
        %v441 = vadd.f32 %v428, %v439
        %v442 = vadd.f32 %v429, %v440
        %443 = vset.pattern.permute.xlu0 6
        %444 = vperm.xlu0 %443, %v349
        %v445 = vpop.permute.xlu0 %444
        %447 = vset.pattern.permute.xlu0 6
        %448 = vperm.xlu0 %447, %v350
        %v449 = vpop.permute.xlu0 %448
        %v451 = vperm.slane %v347, 6
        %v452 = vmul.f32 %v445, %v451
        %v453 = vmul.f32 %v449, %v451
        %v454 = vadd.f32 %v441, %v452
        %v455 = vadd.f32 %v442, %v453
        %456 = vset.pattern.permute.xlu0 7
        %457 = vperm.xlu0 %456, %v349
        %v458 = vpop.permute.xlu0 %457
        %460 = vset.pattern.permute.xlu0 7
        %461 = vperm.xlu0 %460, %v350
        %v462 = vpop.permute.xlu0 %461
        %v464 = vperm.slane %v347, 7
        %v465 = vmul.f32 %v458, %v464
        %v466 = vmul.f32 %v462, %v464
        %v467 = vadd.f32 %v454, %v465
        %v468 = vadd.f32 %v455, %v466
        %469 = vset.pattern.permute.xlu0 8
        %470 = vperm.xlu0 %469, %v349
        %v471 = vpop.permute.xlu0 %470
        %473 = vset.pattern.permute.xlu0 8
        %474 = vperm.xlu0 %473, %v350
        %v475 = vpop.permute.xlu0 %474
        %v477 = vperm.slane %v348, 0
        %v478 = vmul.f32 %v471, %v477
        %v479 = vmul.f32 %v475, %v477
        %v480 = vadd.f32 %v467, %v478
        %v481 = vadd.f32 %v468, %v479
        %482 = vset.pattern.permute.xlu0 9
        %483 = vperm.xlu0 %482, %v349
        %v484 = vpop.permute.xlu0 %483
        %486 = vset.pattern.permute.xlu0 9
        %487 = vperm.xlu0 %486, %v350
        %v488 = vpop.permute.xlu0 %487
        %v490 = vperm.slane %v348, 1
        %v491 = vmul.f32 %v484, %v490
        %v492 = vmul.f32 %v488, %v490
        %v493 = vadd.f32 %v480, %v491
        %v494 = vadd.f32 %v481, %v492
        %495 = vset.pattern.permute.xlu0 10
        %496 = vperm.xlu0 %495, %v349
        %v497 = vpop.permute.xlu0 %496
        %499 = vset.pattern.permute.xlu0 10
        %500 = vperm.xlu0 %499, %v350
        %v501 = vpop.permute.xlu0 %500
        %v503 = vperm.slane %v348, 2
        %v504 = vmul.f32 %v497, %v503
        %v505 = vmul.f32 %v501, %v503
        %v506 = vadd.f32 %v493, %v504
        %v507 = vadd.f32 %v494, %v505
        %508 = vset.pattern.permute.xlu0 11
        %509 = vperm.xlu0 %508, %v349
        %v510 = vpop.permute.xlu0 %509
        %512 = vset.pattern.permute.xlu0 11
        %513 = vperm.xlu0 %512, %v350
        %v514 = vpop.permute.xlu0 %513
        %v516 = vperm.slane %v348, 3
        %v517 = vmul.f32 %v510, %v516
        %v518 = vmul.f32 %v514, %v516
        %v519 = vadd.f32 %v506, %v517
        %v520 = vadd.f32 %v507, %v518
        %521 = vset.pattern.permute.xlu0 12
        %522 = vperm.xlu0 %521, %v349
        %v523 = vpop.permute.xlu0 %522
        %525 = vset.pattern.permute.xlu0 12
        %526 = vperm.xlu0 %525, %v350
        %v527 = vpop.permute.xlu0 %526
        %v529 = vperm.slane %v348, 4
        %v530 = vmul.f32 %v523, %v529
        %v531 = vmul.f32 %v527, %v529
        %v532 = vadd.f32 %v519, %v530
        %v533 = vadd.f32 %v520, %v531
        %534 = vset.pattern.permute.xlu0 13
        %535 = vperm.xlu0 %534, %v349
        %v536 = vpop.permute.xlu0 %535
        %538 = vset.pattern.permute.xlu0 13
        %539 = vperm.xlu0 %538, %v350
        %v540 = vpop.permute.xlu0 %539
        %v542 = vperm.slane %v348, 5
        %v543 = vmul.f32 %v536, %v542
        %v544 = vmul.f32 %v540, %v542
        %v545 = vadd.f32 %v532, %v543
        %v546 = vadd.f32 %v533, %v544
        %547 = vset.pattern.permute.xlu0 14
        %548 = vperm.xlu0 %547, %v349
        %v549 = vpop.permute.xlu0 %548
        %551 = vset.pattern.permute.xlu0 14
        %552 = vperm.xlu0 %551, %v350
        %v553 = vpop.permute.xlu0 %552
        %v555 = vperm.slane %v348, 6
        %v556 = vmul.f32 %v549, %v555
        %v557 = vmul.f32 %v553, %v555
        %v558 = vadd.f32 %v545, %v556
        %v559 = vadd.f32 %v546, %v557
        %560 = vset.pattern.permute.xlu0 15
        %561 = vperm.xlu0 %560, %v349
        %v562 = vpop.permute.xlu0 %561
        %564 = vset.pattern.permute.xlu0 15
        %565 = vperm.xlu0 %564, %v350
        %v566 = vpop.permute.xlu0 %565
        %v568 = vperm.slane %v348, 7
        %v569 = vmul.f32 %v562, %v568
        %v570 = vmul.f32 %v566, %v568
        %v571 = vadd.f32 %v558, %v569
        %v572 = vadd.f32 %v559, %v570
        %vm573 = vcmp.ge.f32.partialorder %v571, 0.0
        %vm574 = vcmp.ge.f32.partialorder %v572, 0.0
        %v575 = vmul.f32 %v571, 0.01
        %v576 = vmul.f32 %v572, 0.01
        %v577 = vsel %vm573, %v571, %v575
        %v578 = vsel %vm574, %v572, %v576
        %v579 = vld [vmem:[%s5] sm:$0x3]
        %v580 = vld [vmem:[%s6] sm:$0x3]
        %582 = vset.pattern.permute.xlu0 0
        %583 = vperm.xlu0 %582, %v580
        %v584 = vpop.permute.xlu0 %583
        %587 = vset.pattern.permute.xlu0 0
        %588 = vperm.xlu0 %587, %v579
        %v589 = vpop.permute.xlu0 %588
        %v591 = vperm.slane %v577, 0
        %v592 = vmul.f32 %v589, %v591
        %v593 = vadd.f32 %v584, %v592
        %594 = vset.pattern.permute.xlu0 1
        %595 = vperm.xlu0 %594, %v579
        %v596 = vpop.permute.xlu0 %595
        %v598 = vperm.slane %v577, 1
        %v599 = vmul.f32 %v596, %v598
        %v600 = vadd.f32 %v593, %v599
        %601 = vset.pattern.permute.xlu0 2
        %602 = vperm.xlu0 %601, %v579
        %v603 = vpop.permute.xlu0 %602
        %v605 = vperm.slane %v577, 2
        %v606 = vmul.f32 %v603, %v605
        %v607 = vadd.f32 %v600, %v606
        %608 = vset.pattern.permute.xlu0 3
        %609 = vperm.xlu0 %608, %v579
        %v610 = vpop.permute.xlu0 %609
        %v612 = vperm.slane %v577, 3
        %v613 = vmul.f32 %v610, %v612
        %v614 = vadd.f32 %v607, %v613
        %615 = vset.pattern.permute.xlu0 4
        %616 = vperm.xlu0 %615, %v579
        %v617 = vpop.permute.xlu0 %616
        %v619 = vperm.slane %v577, 4
        %v620 = vmul.f32 %v617, %v619
        %v621 = vadd.f32 %v614, %v620
        %622 = vset.pattern.permute.xlu0 5
        %623 = vperm.xlu0 %622, %v579
        %v624 = vpop.permute.xlu0 %623
        %v626 = vperm.slane %v577, 5
        %v627 = vmul.f32 %v624, %v626
        %v628 = vadd.f32 %v621, %v627
        %629 = vset.pattern.permute.xlu0 6
        %630 = vperm.xlu0 %629, %v579
        %v631 = vpop.permute.xlu0 %630
        %v633 = vperm.slane %v577, 6
        %v634 = vmul.f32 %v631, %v633
        %v635 = vadd.f32 %v628, %v634
        %636 = vset.pattern.permute.xlu0 7
        %637 = vperm.xlu0 %636, %v579
        %v638 = vpop.permute.xlu0 %637
        %v640 = vperm.slane %v577, 7
        %v641 = vmul.f32 %v638, %v640
        %v642 = vadd.f32 %v635, %v641
        %643 = vset.pattern.permute.xlu0 8
        %644 = vperm.xlu0 %643, %v579
        %v645 = vpop.permute.xlu0 %644
        %v647 = vperm.slane %v578, 0
        %v648 = vmul.f32 %v645, %v647
        %v649 = vadd.f32 %v642, %v648
        %650 = vset.pattern.permute.xlu0 9
        %651 = vperm.xlu0 %650, %v579
        %v652 = vpop.permute.xlu0 %651
        %v654 = vperm.slane %v578, 1
        %v655 = vmul.f32 %v652, %v654
        %v656 = vadd.f32 %v649, %v655
        %657 = vset.pattern.permute.xlu0 10
        %658 = vperm.xlu0 %657, %v579
        %v659 = vpop.permute.xlu0 %658
        %v661 = vperm.slane %v578, 2
        %v662 = vmul.f32 %v659, %v661
        %v663 = vadd.f32 %v656, %v662
        %664 = vset.pattern.permute.xlu0 11
        %665 = vperm.xlu0 %664, %v579
        %v666 = vpop.permute.xlu0 %665
        %v668 = vperm.slane %v578, 3
        %v669 = vmul.f32 %v666, %v668
        %v670 = vadd.f32 %v663, %v669
        %671 = vset.pattern.permute.xlu0 12
        %672 = vperm.xlu0 %671, %v579
        %v673 = vpop.permute.xlu0 %672
        %v675 = vperm.slane %v578, 4
        %v676 = vmul.f32 %v673, %v675
        %v677 = vadd.f32 %v670, %v676
        %678 = vset.pattern.permute.xlu0 13
        %679 = vperm.xlu0 %678, %v579
        %v680 = vpop.permute.xlu0 %679
        %v682 = vperm.slane %v578, 5
        %v683 = vmul.f32 %v680, %v682
        %v684 = vadd.f32 %v677, %v683
        %685 = vset.pattern.permute.xlu0 14
        %686 = vperm.xlu0 %685, %v579
        %v687 = vpop.permute.xlu0 %686
        %v689 = vperm.slane %v578, 6
        %v690 = vmul.f32 %v687, %v689
        %v691 = vadd.f32 %v684, %v690
        %692 = vset.pattern.permute.xlu0 15
        %693 = vperm.xlu0 %692, %v579
        %v694 = vpop.permute.xlu0 %693
        %v696 = vperm.slane %v578, 7
        %v697 = vmul.f32 %v694, %v696
        %v698 = vadd.f32 %v691, %v697
        %v700 = vrot.slane %v698, 1
        %v702 = vmax.f32 %v698, %v700
        %v703 = vperm.slane %v702, 0
        %v704 = vsub.f32 %v698, %v703
        %v705 = vmul.f32 %v704, 1.442695
        %v706 = vpow.pop %v705
        %v708 = vrot.slane %v706, 1
        %v710 = vadd.f32 %v706, %v708
        %v711 = vrcp.pop %v710
        %v712 = vmul.f32 %v710, %v711
        %v713 = vsub.f32 1.0, %v712
        %v714 = vmul.f32 %v711, %v713
        %v715 = vadd.f32 %v711, %v714
        %vm716 = vweird.f32 %v710
        %vm717 = vweird.f32 %v711
        %vm718 = vmor %vm716, %vm717
        %v719 = vsel %vm718, %v711, %v715
        %v720 = vand.u32 2147483647, %v710
        %vm721 = vcmp.eq.f32.partialorder %v720, 8.507059e+37
        %v722 = vand.u32 %v710, 2147483648
        %v723 = vor.u32 1.1754944e-38, %v722
        %v724 = vsel %vm721, %v723, %v719
        %v725 = vperm.slane %v724, 0
        %v726 = vmul.f32 %v706, %v725
        %727 = vst [vmem:[%s269] sm:$0x3] %v726
        %s728 = sand.u32 %s181, 1
        %s729 = scalar_lea.sflag [#allocation3], %s728
        %s730 = sand.u32 %s181, 1
        %s731 = smul.addr %s730, 2
        %s732 = scalar_lea.vmem [#allocation2], %s731
        // Predicated region
        $region49: #{tpu_custom_call.1} parent=47 // pred_check
          %p733 = pneg %p191
        $region50: #{tpu_custom_call.1} parent=47 // pred_check_branch
          %735 = sbr.rel (%p733) target = $region52
        $region51: #{tpu_custom_call.1} parent=47 // pred_region
          %737 = vsyncadd %s729, 0
          %s738 = smul.addr %s21, 2
          %s739 = scalar_lea.hbm %s7, %s738
          %s741 = sshll.u32 %s732, 4
          %s742 = int_to_ptr.vmem [resolvable:$true] %s741
          %s743 = sshll.u32 %s739, 4
          %s744 = int_to_ptr.hbm [resolvable:$true] %s743
          %746 = dma.vmem_to_hbm [thread:$0]  %s742, 32, %s744, %s729
        $region52: #{tpu_custom_call.1} parent=47 // pred_fallthru
          _
      $region48: #{tpu_custom_call.1} parent=5 // pred_fallthru
        _
      %p747 = scmp.le.s32.totalorder 2, %s16
      // Predicated region
      $region53: #{tpu_custom_call.1} parent=5 // pred_check
        %p748 = pneg %p747
      $region54: #{tpu_custom_call.1} parent=5 // pred_check_branch
        %750 = sbr.rel (%p748) target = $region56
      $region55: #{tpu_custom_call.1} parent=5 // pred_region
        %s751 = ssub.s32 %s16, 2
        // Predicated region
        $region57: #{tpu_custom_call.1} parent=55 // pred_check
          %p752 = pneg %p197
        $region58: #{tpu_custom_call.1} parent=55 // pred_check_branch
          %754 = sbr.rel (%p752) target = $region60
        $region59: #{tpu_custom_call.1} parent=55 // pred_region
          %s755 = sand.u32 %s182, 1
          %s756 = scalar_lea.sflag [#allocation3], %s755
          %s757 = sand.u32 %s182, 1
          %s758 = smul.addr %s757, 2
          %s759 = scalar_lea.vmem [#allocation2], %s758
          %761 = dma.done %s756, 32
        $region60: #{tpu_custom_call.1} parent=55 // pred_fallthru
          _
      $region56: #{tpu_custom_call.1} parent=5 // pred_fallthru
        _
    $region6: #{tpu_custom_call.1} parent=1 // loop_footer
      %s20 = sadd.s32 1, %s16
    $region7: #{tpu_custom_call.1} parent=1 // loop_footer_branch
      %15 = sbr.rel target = $region3
    $region8: #{tpu_custom_call.1} parent=1 // loop_exit
      _
    %762 = vsyncpa [#allocation3], 1
    %s763 = scalar_lea.sflag [#allocation3], 1
    %764 = vsyncpa %s763, 1

</llo_original>
